<compile_context>
chip_gen: v7x
topology: tpu7x:2x2x1
jax: 0.10.0
libtpu: 0.0.40
codegen_flags: <defaults>
</compile_context>

<pallas_src>
import functools

import numpy as np
import jax
import jax.numpy as jnp
from jax.experimental import pallas as pl
from jax.experimental.pallas import tpu as pltpu

_DISCRETE_ACTION_TABLE = np.array(
    [[0.0, 0.0, 0.0],
     [-0.6, 0.0, 0.0],
     [0.6, 0.0, 0.0],
     [0.0, 0.2, 0.0],
     [0.0, 0.0, 0.8]], dtype=np.float32)

_N_CONC = _DISCRETE_ACTION_TABLE.shape[0]      # 5  (Dirichlet event size)
_ACTION_DIM = _DISCRETE_ACTION_TABLE.shape[1]  # 3
_EPS = 1e-6
_H1, _H2 = 128, 64
_OUT_LANES = 128                               # lane-dense fused output width


def _make_placement():
    """[C1 | C2] (5, 256): conc@C1 -> cols 0:5; mean@C2 -> cols 5:10, mean@table -> cols 10:13."""
    c1 = np.zeros((_N_CONC, _OUT_LANES), np.float32)
    c1[:, 0:_N_CONC] = np.eye(_N_CONC, dtype=np.float32)
    c2 = np.zeros((_N_CONC, _OUT_LANES), np.float32)
    c2[:, _N_CONC:2 * _N_CONC] = np.eye(_N_CONC, dtype=np.float32)
    c2[:, 2 * _N_CONC:2 * _N_CONC + _ACTION_DIM] = _DISCRETE_ACTION_TABLE
    return np.concatenate([c1, c2], axis=1)    # (5, 256)


_CC_NP = _make_placement()


def _dirichlet_head_kernel(x_ref, w1_ref, b1_ref, w2_ref, b2_ref, w3_ref, b3_ref,
                           cc_ref, out_ref):
    x = x_ref[...]                                                        # (TB, F)

    h1 = jnp.dot(x, w1_ref[...], preferred_element_type=jnp.float32)     # (TB, 128)
    h1 = jnp.maximum(h1 + b1_ref[...], 0.0)

    h2 = jnp.dot(h1, w2_ref[...], preferred_element_type=jnp.float32)    # (TB, 64)
    h2 = jnp.maximum(h2 + b2_ref[...], 0.0)

    logits = jnp.dot(h2, w3_ref[...], preferred_element_type=jnp.float32) + b3_ref[...]  # (TB, 5)

    # Dirichlet concentration: numerically stable softplus + eps
    conc = jnp.maximum(logits, 0.0) + jnp.log(1.0 + jnp.exp(-jnp.abs(logits))) + _EPS

    # deterministic action_event = Dirichlet mean = conc * (1/sum); exact reciprocal (tolerance).
    inv = 1.0 / jnp.sum(conc, axis=-1, keepdims=True)                    # (TB, 1)

    # single small MXU matmul folds placement + action-table matmul; single lane-dense store.
    p = jnp.dot(conc, cc_ref[...], preferred_element_type=jnp.float32)   # (TB, 256)
    out_ref[...] = p[:, :_OUT_LANES] + inv * p[:, _OUT_LANES:]           # (TB, 128)


def _round_up(x, m):
    return ((x + m - 1) // m) * m


@functools.partial(jax.jit, static_argnames=("tile_b",))
def dirichlet_head_forward(latents, params, *, tile_b=512):
    """latents: (B, F) float32.

    Returns:
      concentration (B, 5)  -- the Dirichlet parameters (module.forward)
      action_event  (B, 5)  -- deterministic step: Dirichlet mean
      action        (B, 3)  -- action_event @ _DISCRETE_ACTION_TABLE
    """
    w1, b1, w2, b2, w3, b3 = params
    B, F = latents.shape

    # ---- adaptive, VMEM-safe batch tiling --------------------------------
    b8 = _round_up(B, 8)
    # keep double-buffered x + out blocks ~<=10 MiB (v5e scoped-VMEM default is 16 MiB)
    vmem_budget = 10 * 1024 * 1024
    max_tb = max(8, ((vmem_budget // (8 * (F + _OUT_LANES))) // 8) * 8)
    tb_cap = max(8, min(tile_b, max_tb))
    n_tiles = pl.cdiv(b8, tb_cap)
    if n_tiles < 2 and b8 >= 256:
        n_tiles = 2                       # give both v7x TensorCores work
    tb = _round_up(pl.cdiv(b8, n_tiles), 8)
    b_pad = n_tiles * tb                  # near-minimal padding (last tile almost full)
    if b_pad != B:
        latents = jnp.pad(latents, ((0, b_pad - B), (0, 0)))
    grid = (n_tiles,)

    cc = jnp.asarray(_CC_NP)              # (5, 256) placement/action-table constant, as an input

    cost = pl.CostEstimate(
        flops=2 * b_pad * (F * _H1 + _H1 * _H2 + _H2 * _N_CONC + _N_CONC * 2 * _OUT_LANES),
        transcendentals=2 * b_pad * _N_CONC,
        bytes_accessed=4 * (b_pad * F + F * _H1 + _H1 + _H1 * _H2 + _H2
                            + _H2 * _N_CONC + _N_CONC + _N_CONC * 2 * _OUT_LANES
                            + b_pad * _OUT_LANES),
    )

    fused = pl.pallas_call(
        _dirichlet_head_kernel,
        out_shape=jax.ShapeDtypeStruct((b_pad, _OUT_LANES), jnp.float32),
        grid_spec=pltpu.PrefetchScalarGridSpec(
            num_scalar_prefetch=0,
            grid=grid,
            in_specs=[
                pl.BlockSpec((tb, F), lambda i: (i, 0)),                  # x tile (pipelined)
                pl.BlockSpec((F, _H1), lambda i: (0, 0)),                 # weights: resident
                pl.BlockSpec((1, _H1), lambda i: (0, 0)),
                pl.BlockSpec((_H1, _H2), lambda i: (0, 0)),
                pl.BlockSpec((1, _H2), lambda i: (0, 0)),
                pl.BlockSpec((_H2, _N_CONC), lambda i: (0, 0)),
                pl.BlockSpec((1, _N_CONC), lambda i: (0, 0)),
                pl.BlockSpec((_N_CONC, 2 * _OUT_LANES), lambda i: (0, 0)),  # placement consts
            ],
            out_specs=pl.BlockSpec((tb, _OUT_LANES), lambda i: (i, 0)),   # lane-dense (tb,128)
        ),
        compiler_params=pltpu.CompilerParams(dimension_semantics=("parallel",)),
        cost_estimate=cost,
    )(latents, w1, b1, w2, b2, w3, b3, cc)

    concentration = fused[:B, 0:_N_CONC]
    action_event = fused[:B, _N_CONC:2 * _N_CONC]
    action = fused[:B, 2 * _N_CONC:2 * _N_CONC + _ACTION_DIM]
    return concentration, action_event, action


def init_params(key, latent_features):
    """Deterministic init mirroring torch.nn.Linear default (uniform +-1/sqrt(fan_in))."""
    def linear(key, fan_in, fan_out):
        kw, kb = jax.random.split(key)
        bound = 1.0 / jnp.sqrt(jnp.float32(fan_in))
        w = jax.random.uniform(kw, (fan_in, fan_out), jnp.float32, -bound, bound)
        b = jax.random.uniform(kb, (1, fan_out), jnp.float32, -bound, bound)
        return w, b

    k1, k2, k3 = jax.random.split(key, 3)
    w1, b1 = linear(k1, latent_features, _H1)
    w2, b2 = linear(k2, _H1, _H2)
    w3, b3 = linear(k3, _H2, _N_CONC)
    return (w1, b1, w2, b2, w3, b3)


def reference_forward(latents, params):
    w1, b1, w2, b2, w3, b3 = params
    h1 = jnp.maximum(latents @ w1 + b1, 0.0)
    h2 = jnp.maximum(h1 @ w2 + b2, 0.0)
    logits = h2 @ w3 + b3
    conc = jax.nn.softplus(logits) + _EPS
    mean = conc / jnp.sum(conc, axis=-1, keepdims=True)
    action = mean @ jnp.asarray(_DISCRETE_ACTION_TABLE)
    return conc, mean, action


if __name__ == "__main__":
    key = jax.random.PRNGKey(0)
    k_params, k_x1, k_x2 = jax.random.split(key, 3)

    F = 32  # latent_features
    params = init_params(k_params, F)

    # small batch (single tile)
    latents = jax.random.normal(k_x1, (8, F), jnp.float32)
    conc, action_event, action = jax.block_until_ready(dirichlet_head_forward(latents, params))
    ref_conc, ref_mean, ref_action = reference_forward(latents, params)
    assert jnp.allclose(conc, ref_conc, atol=1e-5), "concentration mismatch"
    assert jnp.allclose(action_event, ref_mean, atol=1e-5), "action_event (Dirichlet mean) mismatch"
    assert jnp.allclose(action, ref_action, atol=1e-5), "action mismatch"

    # non-multiple-of-8 batch exercises the padding / adaptive-tile path
    latents2 = jax.random.normal(k_x2, (19, F), jnp.float32)
    conc2, mean2, act2 = jax.block_until_ready(dirichlet_head_forward(latents2, params))
    ref_conc2, ref_mean2, ref_act2 = reference_forward(latents2, params)
    assert jnp.allclose(conc2, ref_conc2, atol=1e-5), "concentration mismatch (padded batch)"
    assert jnp.allclose(mean2, ref_mean2, atol=1e-5), "mean mismatch (padded batch)"
    assert jnp.allclose(act2, ref_act2, atol=1e-5), "action mismatch (padded batch)"

    print("KERNEL_OK")
</pallas_src>

<mosaic_0001>
module attributes {stable_mosaic.version = 11 : i64} {
  func.func @_dirichlet_head_kernel(%arg0: i32, %arg1: memref<8x32xf32, #tpu.memory_space<vmem>>, %arg2: memref<32x128xf32, #tpu.memory_space<vmem>>, %arg3: memref<1x128xf32, #tpu.memory_space<vmem>>, %arg4: memref<128x64xf32, #tpu.memory_space<vmem>>, %arg5: memref<1x64xf32, #tpu.memory_space<vmem>>, %arg6: memref<64x5xf32, #tpu.memory_space<vmem>>, %arg7: memref<1x5xf32, #tpu.memory_space<vmem>>, %arg8: memref<5x256xf32, #tpu.memory_space<vmem>>, %arg9: memref<8x128xf32, #tpu.memory_space<vmem>>) attributes {dimension_semantics = [#tpu.dimension_semantics<parallel>], iteration_bounds = array<i64: 1>, scalar_prefetch = 0 : i64, scratch_operands = 0 : i64, tpu.core_type = #tpu.core_type<tc>, window_params = [{transform_indices = @transform_0, window_bounds = array<i64: 8, 32>}, {pipeline_mode = #tpu.pipeline_mode<synchronous>, transform_indices = @transform_1, window_bounds = array<i64: 32, 128>}, {pipeline_mode = #tpu.pipeline_mode<synchronous>, transform_indices = @transform_2, window_bounds = array<i64: 1, 128>}, {pipeline_mode = #tpu.pipeline_mode<synchronous>, transform_indices = @transform_3, window_bounds = array<i64: 128, 64>}, {pipeline_mode = #tpu.pipeline_mode<synchronous>, transform_indices = @transform_4, window_bounds = array<i64: 1, 64>}, {pipeline_mode = #tpu.pipeline_mode<synchronous>, transform_indices = @transform_5, window_bounds = array<i64: 64, 5>}, {pipeline_mode = #tpu.pipeline_mode<synchronous>, transform_indices = @transform_6, window_bounds = array<i64: 1, 5>}, {pipeline_mode = #tpu.pipeline_mode<synchronous>, transform_indices = @transform_7, window_bounds = array<i64: 5, 256>}, {transform_indices = @transform_8, window_bounds = array<i64: 8, 128>}]} {
    %c0 = arith.constant 0 : index
    %c0_0 = arith.constant 0 : index
    %0 = vector.load %arg1[%c0, %c0_0] : memref<8x32xf32, #tpu.memory_space<vmem>>, vector<8x32xf32>
    %c0_1 = arith.constant 0 : index
    %c0_2 = arith.constant 0 : index
    %1 = vector.load %arg2[%c0_1, %c0_2] : memref<32x128xf32, #tpu.memory_space<vmem>>, vector<32x128xf32>
    %cst = arith.constant dense<0.000000e+00> : vector<8x128xf32>
    %2 = tpu.matmul %0, %1, %cst {dimension_numbers = #tpu.dot_dimension_numbers<[1], [0], [0], [1], [0, 0, 1, 1], [], []>} : vector<8x32xf32>, vector<32x128xf32>, vector<8x128xf32> -> vector<8x128xf32>
    %c0_3 = arith.constant 0 : index
    %c0_4 = arith.constant 0 : index
    %3 = vector.load %arg3[%c0_3, %c0_4] : memref<1x128xf32, #tpu.memory_space<vmem>>, vector<1x128xf32>
    %4 = vector.broadcast %3 : vector<1x128xf32> to vector<8x128xf32>
    %5 = arith.addf %2, %4 : vector<8x128xf32>
    %cst_5 = arith.constant 0.000000e+00 : f32
    %6 = vector.broadcast %cst_5 : f32 to vector<8x128xf32>
    %7 = arith.maximumf %5, %6 : vector<8x128xf32>
    %c0_6 = arith.constant 0 : index
    %c0_7 = arith.constant 0 : index
    %8 = vector.load %arg4[%c0_6, %c0_7] : memref<128x64xf32, #tpu.memory_space<vmem>>, vector<128x64xf32>
    %cst_8 = arith.constant dense<0.000000e+00> : vector<8x64xf32>
    %9 = tpu.matmul %7, %8, %cst_8 {dimension_numbers = #tpu.dot_dimension_numbers<[1], [0], [0], [1], [0, 0, 1, 1], [], []>} : vector<8x128xf32>, vector<128x64xf32>, vector<8x64xf32> -> vector<8x64xf32>
    %c0_9 = arith.constant 0 : index
    %c0_10 = arith.constant 0 : index
    %10 = vector.load %arg5[%c0_9, %c0_10] : memref<1x64xf32, #tpu.memory_space<vmem>>, vector<1x64xf32>
    %11 = vector.broadcast %10 : vector<1x64xf32> to vector<8x64xf32>
    %12 = arith.addf %9, %11 : vector<8x64xf32>
    %cst_11 = arith.constant 0.000000e+00 : f32
    %13 = vector.broadcast %cst_11 : f32 to vector<8x64xf32>
    %14 = arith.maximumf %12, %13 : vector<8x64xf32>
    %c0_12 = arith.constant 0 : index
    %c0_13 = arith.constant 0 : index
    %15 = vector.load %arg6[%c0_12, %c0_13] : memref<64x5xf32, #tpu.memory_space<vmem>>, vector<64x5xf32>
    %cst_14 = arith.constant dense<0.000000e+00> : vector<8x5xf32>
    %16 = tpu.matmul %14, %15, %cst_14 {dimension_numbers = #tpu.dot_dimension_numbers<[1], [0], [0], [1], [0, 0, 1, 1], [], []>} : vector<8x64xf32>, vector<64x5xf32>, vector<8x5xf32> -> vector<8x5xf32>
    %c0_15 = arith.constant 0 : index
    %c0_16 = arith.constant 0 : index
    %17 = vector.load %arg7[%c0_15, %c0_16] : memref<1x5xf32, #tpu.memory_space<vmem>>, vector<1x5xf32>
    %18 = vector.broadcast %17 : vector<1x5xf32> to vector<8x5xf32>
    %19 = arith.addf %16, %18 : vector<8x5xf32>
    %cst_17 = arith.constant 0.000000e+00 : f32
    %20 = vector.broadcast %cst_17 : f32 to vector<8x5xf32>
    %21 = arith.maximumf %19, %20 : vector<8x5xf32>
    %22 = math.absf %19 : vector<8x5xf32>
    %cst_18 = arith.constant 0.000000e+00 : f32
    %23 = vector.broadcast %cst_18 : f32 to vector<8x5xf32>
    %24 = arith.subf %23, %22 : vector<8x5xf32>
    %25 = math.exp %24 : vector<8x5xf32>
    %cst_19 = arith.constant 1.000000e+00 : f32
    %26 = vector.broadcast %cst_19 : f32 to vector<8x5xf32>
    %27 = arith.addf %26, %25 : vector<8x5xf32>
    %28 = math.log %27 : vector<8x5xf32>
    %29 = arith.addf %21, %28 : vector<8x5xf32>
    %cst_20 = arith.constant 9.99999997E-7 : f32
    %30 = vector.broadcast %cst_20 : f32 to vector<8x5xf32>
    %31 = arith.addf %29, %30 : vector<8x5xf32>
    %cst_21 = arith.constant dense<0.000000e+00> : vector<8xf32>
    %32 = vector.multi_reduction <add>, %31, %cst_21 [1] : vector<8x5xf32> to vector<8xf32>
    %33 = vector.shape_cast %32 : vector<8xf32> to vector<8x1xf32>
    %cst_22 = arith.constant 1.000000e+00 : f32
    %34 = vector.broadcast %cst_22 : f32 to vector<8x1xf32>
    %35 = arith.divf %34, %33 : vector<8x1xf32>
    %c0_23 = arith.constant 0 : index
    %c0_24 = arith.constant 0 : index
    %36 = vector.load %arg8[%c0_23, %c0_24] : memref<5x256xf32, #tpu.memory_space<vmem>>, vector<5x256xf32>
    %cst_25 = arith.constant dense<0.000000e+00> : vector<8x256xf32>
    %37 = tpu.matmul %31, %36, %cst_25 {dimension_numbers = #tpu.dot_dimension_numbers<[1], [0], [0], [1], [0, 0, 1, 1], [], []>} : vector<8x5xf32>, vector<5x256xf32>, vector<8x256xf32> -> vector<8x256xf32>
    %38 = vector.extract_strided_slice %37 {offsets = [0, 0], sizes = [8, 128], strides = [1, 1]} : vector<8x256xf32> to vector<8x128xf32>
    %39 = vector.extract_strided_slice %37 {offsets = [0, 128], sizes = [8, 128], strides = [1, 1]} : vector<8x256xf32> to vector<8x128xf32>
    %40 = vector.broadcast %35 : vector<8x1xf32> to vector<8x128xf32>
    %41 = arith.mulf %40, %39 : vector<8x128xf32>
    %42 = arith.addf %38, %41 : vector<8x128xf32>
    %c0_26 = arith.constant 0 : index
    %c0_27 = arith.constant 0 : index
    %43 = vector.load %arg9[%c0_26, %c0_27] : memref<8x128xf32, #tpu.memory_space<vmem>>, vector<8x128xf32>
    tpu.vector_store %arg9[%c0_26, %c0_27], %42 {strides = array<i32>} : memref<8x128xf32, #tpu.memory_space<vmem>>, vector<8x128xf32>,
    return
  }
  func.func @transform_0(%arg0: i32) -> (i32, i32) {
    %c0_i32 = arith.constant 0 : i32
    %c0_i32_0 = arith.constant 0 : i32
    return %arg0, %c0_i32 : i32, i32
  }
  func.func @transform_1(%arg0: i32) -> (i32, i32) {
    %c0_i32 = arith.constant 0 : i32
    %c0_i32_0 = arith.constant 0 : i32
    %c0_i32_1 = arith.constant 0 : i32
    return %c0_i32, %c0_i32_0 : i32, i32
  }
  func.func @transform_2(%arg0: i32) -> (i32, i32) {
    %c0_i32 = arith.constant 0 : i32
    %c0_i32_0 = arith.constant 0 : i32
    %c0_i32_1 = arith.constant 0 : i32
    return %c0_i32, %c0_i32_0 : i32, i32
  }
  func.func @transform_3(%arg0: i32) -> (i32, i32) {
    %c0_i32 = arith.constant 0 : i32
    %c0_i32_0 = arith.constant 0 : i32
    %c0_i32_1 = arith.constant 0 : i32
    return %c0_i32, %c0_i32_0 : i32, i32
  }
  func.func @transform_4(%arg0: i32) -> (i32, i32) {
    %c0_i32 = arith.constant 0 : i32
    %c0_i32_0 = arith.constant 0 : i32
    %c0_i32_1 = arith.constant 0 : i32
    return %c0_i32, %c0_i32_0 : i32, i32
  }
  func.func @transform_5(%arg0: i32) -> (i32, i32) {
    %c0_i32 = arith.constant 0 : i32
    %c0_i32_0 = arith.constant 0 : i32
    %c0_i32_1 = arith.constant 0 : i32
    return %c0_i32, %c0_i32_0 : i32, i32
  }
  func.func @transform_6(%arg0: i32) -> (i32, i32) {
    %c0_i32 = arith.constant 0 : i32
    %c0_i32_0 = arith.constant 0 : i32
    %c0_i32_1 = arith.constant 0 : i32
    return %c0_i32, %c0_i32_0 : i32, i32
  }
  func.func @transform_7(%arg0: i32) -> (i32, i32) {
    %c0_i32 = arith.constant 0 : i32
    %c0_i32_0 = arith.constant 0 : i32
    %c0_i32_1 = arith.constant 0 : i32
    return %c0_i32, %c0_i32_0 : i32, i32
  }
  func.func @transform_8(%arg0: i32) -> (i32, i32) {
    %c0_i32 = arith.constant 0 : i32
    %c0_i32_0 = arith.constant 0 : i32
    return %arg0, %c0_i32 : i32, i32
  }
}

</mosaic_0001>

<llo_original>
// kernel: dirichlet_head_forward.1
$region0: #{dirichlet_head_forward.1}
  #allocation0 [shape = 'u32[]', space=smem, size = 0x4, offset = 0x4, fixed_abs, tag = 'smem constant byte address 0x4 - core index']
  #allocation1 [shape = 'u32[144,128]{1,0:T(1,128)}', space=vmem, size = 0x12000, scoped, tag = 'internal scratch']
  %s0 = inlined_call_operand.vmem [shape: f32[8,32], index: 0, kind: input, shape index: {}]
  %s1 = inlined_call_operand.vmem [shape: f32[32,128], index: 1, kind: input, shape index: {}]
  %s2 = inlined_call_operand.vmem [shape: f32[1,128], index: 2, kind: input, shape index: {}]
  %s3 = inlined_call_operand.vmem [shape: f32[128,64], index: 3, kind: input, shape index: {}]
  %s4 = inlined_call_operand.vmem [shape: f32[1,64], index: 4, kind: input, shape index: {}]
  %s5 = inlined_call_operand.vmem [shape: f32[64,5], index: 5, kind: input, shape index: {}]
  %s6 = inlined_call_operand.vmem [shape: f32[1,5], index: 6, kind: input, shape index: {}]
  %s7 = inlined_call_operand.vmem [shape: f32[5,256], index: 7, kind: input, shape index: {}]
  %s8 = inlined_call_operand.vmem [shape: f32[8,128], index: 8, kind: output, shape index: {}]
  %s9 = sld [smem:[#allocation0]]
  $region42: #{dirichlet_head_forward.1} parent=0
    _
  %s11 = ssub.s32 1, %s9
  %s12 = scalar_select 0, %s11, %s9
  // Predicated region
  $region2: #{dirichlet_head_forward.1} parent=0 // pred_check
    _
  $region3: #{dirichlet_head_forward.1} parent=0 // pred_check_branch
    %14 = sbr.rel (0) target = $region5
  $region4: #{dirichlet_head_forward.1} parent=0 // pred_region
    _
  $region5: #{dirichlet_head_forward.1} parent=0 // pred_fallthru
    _
  // Predicated region
  $region6: #{dirichlet_head_forward.1} parent=0 // pred_check
    _
  $region7: #{dirichlet_head_forward.1} parent=0 // pred_check_branch
    %16 = sbr.rel (0) target = $region9
  $region8: #{dirichlet_head_forward.1} parent=0 // pred_region
    _
  $region9: #{dirichlet_head_forward.1} parent=0 // pred_fallthru
    _
  // Predicated region
  $region10: #{dirichlet_head_forward.1} parent=0 // pred_check
    _
  $region11: #{dirichlet_head_forward.1} parent=0 // pred_check_branch
    %18 = sbr.rel (0) target = $region13
  $region12: #{dirichlet_head_forward.1} parent=0 // pred_region
    _
  $region13: #{dirichlet_head_forward.1} parent=0 // pred_fallthru
    _
  // Predicated region
  $region14: #{dirichlet_head_forward.1} parent=0 // pred_check
    _
  $region15: #{dirichlet_head_forward.1} parent=0 // pred_check_branch
    %20 = sbr.rel (0) target = $region17
  $region16: #{dirichlet_head_forward.1} parent=0 // pred_region
    _
  $region17: #{dirichlet_head_forward.1} parent=0 // pred_fallthru
    _
  // Predicated region
  $region18: #{dirichlet_head_forward.1} parent=0 // pred_check
    _
  $region19: #{dirichlet_head_forward.1} parent=0 // pred_check_branch
    %22 = sbr.rel (0) target = $region21
  $region20: #{dirichlet_head_forward.1} parent=0 // pred_region
    _
  $region21: #{dirichlet_head_forward.1} parent=0 // pred_fallthru
    _
  // Predicated region
  $region22: #{dirichlet_head_forward.1} parent=0 // pred_check
    _
  $region23: #{dirichlet_head_forward.1} parent=0 // pred_check_branch
    %24 = sbr.rel (0) target = $region25
  $region24: #{dirichlet_head_forward.1} parent=0 // pred_region
    _
  $region25: #{dirichlet_head_forward.1} parent=0 // pred_fallthru
    _
  // Predicated region
  $region26: #{dirichlet_head_forward.1} parent=0 // pred_check
    _
  $region27: #{dirichlet_head_forward.1} parent=0 // pred_check_branch
    %26 = sbr.rel (0) target = $region29
  $region28: #{dirichlet_head_forward.1} parent=0 // pred_region
    _
  $region29: #{dirichlet_head_forward.1} parent=0 // pred_fallthru
    _
  // Predicated region
  $region30: #{dirichlet_head_forward.1} parent=0 // pred_check
    _
  $region31: #{dirichlet_head_forward.1} parent=0 // pred_check_branch
    %28 = sbr.rel (0) target = $region33
  $region32: #{dirichlet_head_forward.1} parent=0 // pred_region
    _
  $region33: #{dirichlet_head_forward.1} parent=0 // pred_fallthru
    _
  %v29 = vld [vmem:[%s0] sm:$0xff]
  %v30 = vld [vmem:[%s1] sm:$0xff]
  %v31 = vld [vmem:[%s1 + $0x8] sm:$0xff]
  %v32 = vld [vmem:[%s1 + $0x10] sm:$0xff]
  %v33 = vld [vmem:[%s1 + $0x18] sm:$0xff]
  %v34 = vld [vmem:[%s2] sm:$0x1]
  %v36 = vlaneseq
  %v37 = vshrl.u32 %v36, 7
  %v38 = vsub.s32 0, %v37
  %v39 = vrot.slane %v34, %v38
  %vm41 = vcmask 261120
  %v43 = vsel %vm41, %v29, 0
  %45 = vmatprep.subr.mxu0 0.0
  %46 = vmatpush1.msra.mxu0 %v30
  %47 = vmatprep.subr.mxu0 0.0
  %48 = vmatpush1.msra.mxu0 %v31
  %49 = vmatprep.subr.mxu0 0.0
  %50 = vmatpush1.msra.mxu0 %v32
  %51 = vmatprep.subr.mxu0 0.0
  %52 = vmatpush1.msra.mxu0 %v33
  %53 = vmatprep.subr.mxu0 0.0
  %54 = vmatpush1.msra.mxu0 0.0
  %55 = vmatprep.subr.mxu0 0.0
  %56 = vmatpush1.msra.mxu0 0.0
  %57 = vmatprep.subr.mxu0 0.0
  %58 = vmatpush1.msra.mxu0 0.0
  %59 = vmatprep.subr.mxu0 0.0
  %60 = vmatpush1.msra.mxu0 0.0
  %61 = vmatprep.subr.mxu0 0.0
  %62 = vmatpush1.msra.mxu0 0.0
  %63 = vmatprep.subr.mxu0 0.0
  %64 = vmatpush1.msra.mxu0 0.0
  %65 = vmatprep.subr.mxu0 0.0
  %66 = vmatpush1.msra.mxu0 0.0
  %67 = vmatprep.subr.mxu0 0.0
  %68 = vmatpush1.msra.mxu0 0.0
  %69 = vmatprep.subr.mxu0 0.0
  %70 = vmatpush1.msra.mxu0 0.0
  %71 = vmatprep.subr.mxu0 0.0
  %72 = vmatpush1.msra.mxu0 0.0
  %73 = vmatprep.subr.mxu0 0.0
  %74 = vmatpush1.msra.mxu0 0.0
  %75 = vmatprep.subr.mxu0 0.0
  %76 = vmatpush1.msra.mxu0 0.0
  %77 = vmatprep.subr.mxu0 0.0
  %78 = vmatpush1.msra.mxu0 0.0
  %79 = vmatprep.subr.mxu0 0.0
  %80 = vmatpush1.msra.mxu0 0.0
  %81 = vmatprep.subr.mxu0 0.0
  %82 = vmatpush1.msra.mxu0 0.0
  %83 = vmatprep.subr.mxu0 0.0
  %84 = vmatpush1.msra.mxu0 0.0
  %85 = vmatprep.subr.mxu0 0.0
  %86 = vmatpush1.msra.mxu0 0.0
  %87 = vmatprep.subr.mxu0 0.0
  %88 = vmatpush1.msra.mxu0 0.0
  %89 = vmatprep.subr.mxu0 0.0
  %90 = vmatpush1.msra.mxu0 0.0
  %91 = vmatprep.subr.mxu0 0.0
  %92 = vmatpush1.msra.mxu0 0.0
  %93 = vmatprep.subr.mxu0 0.0
  %94 = vmatpush1.msra.mxu0 0.0
  %95 = vmatprep.subr.mxu0 0.0
  %96 = vmatpush1.msra.mxu0 0.0
  %97 = vmatprep.subr.mxu0 0.0
  %98 = vmatpush1.msra.mxu0 0.0
  %99 = vmatprep.subr.mxu0 0.0
  %100 = vmatpush1.msra.mxu0 0.0
  %101 = vmatprep.subr.mxu0 0.0
  %102 = vmatpush1.msra.mxu0 0.0
  %103 = vmatprep.subr.mxu0 0.0
  %104 = vmatpush1.msra.mxu0 0.0
  %105 = vmatprep.subr.mxu0 0.0
  %106 = vmatpush1.msra.mxu0 0.0
  %107 = vmatprep.subr.mxu0 0.0
  %108 = vmatpush1.msra.mxu0 0.0
  %109 = vmatprep.mubr.f32.mxu0 0.0
  %110 = vmatmul.mubr.f32.gmra.mrb[0].mxu0 %v43
  %v111 = vpop.f32.mrb[0].mxu0
  %v112 = vadd.f32 %v39, %v111
  %v113 = vpop.f32.mrb[0].mxu0
  %114 = vdwg.mxu0
  %v115 = vmax.f32 %v112, 0.0
  %v116 = vld [vmem:[%s3] sm:$0xff]
  %v117 = vld [vmem:[%s3 + $0x8] sm:$0xff]
  %v118 = vld [vmem:[%s3 + $0x10] sm:$0xff]
  %v119 = vld [vmem:[%s3 + $0x18] sm:$0xff]
  %v120 = vld [vmem:[%s3 + $0x20] sm:$0xff]
  %v121 = vld [vmem:[%s3 + $0x28] sm:$0xff]
  %v122 = vld [vmem:[%s3 + $0x30] sm:$0xff]
  %v123 = vld [vmem:[%s3 + $0x38] sm:$0xff]
  %v124 = vld [vmem:[%s3 + $0x40] sm:$0xff]
  %v125 = vld [vmem:[%s3 + $0x48] sm:$0xff]
  %v126 = vld [vmem:[%s3 + $0x50] sm:$0xff]
  %v127 = vld [vmem:[%s3 + $0x58] sm:$0xff]
  %v128 = vld [vmem:[%s3 + $0x60] sm:$0xff]
  %v129 = vld [vmem:[%s3 + $0x68] sm:$0xff]
  %v130 = vld [vmem:[%s3 + $0x70] sm:$0xff]
  %v131 = vld [vmem:[%s3 + $0x78] sm:$0xff]
  %v132 = vld [vmem:[%s4] sm:$0x1]
  %v134 = vlaneseq
  %v135 = vshrl.u32 %v134, 7
  %v136 = vsub.s32 0, %v135
  %v137 = vrot.slane %v132, %v136
  %139 = vmatprep.subr.mxu0 0.0
  %140 = vmatpush1.msra.mxu0 %v116
  %141 = vmatprep.subr.mxu0 0.0
  %142 = vmatpush1.msra.mxu0 %v117
  %143 = vmatprep.subr.mxu0 0.0
  %144 = vmatpush1.msra.mxu0 %v118
  %145 = vmatprep.subr.mxu0 0.0
  %146 = vmatpush1.msra.mxu0 %v119
  %147 = vmatprep.subr.mxu0 0.0
  %148 = vmatpush1.msra.mxu0 %v120
  %149 = vmatprep.subr.mxu0 0.0
  %150 = vmatpush1.msra.mxu0 %v121
  %151 = vmatprep.subr.mxu0 0.0
  %152 = vmatpush1.msra.mxu0 %v122
  %153 = vmatprep.subr.mxu0 0.0
  %154 = vmatpush1.msra.mxu0 %v123
  %155 = vmatprep.subr.mxu0 0.0
  %156 = vmatpush1.msra.mxu0 %v124
  %157 = vmatprep.subr.mxu0 0.0
  %158 = vmatpush1.msra.mxu0 %v125
  %159 = vmatprep.subr.mxu0 0.0
  %160 = vmatpush1.msra.mxu0 %v126
  %161 = vmatprep.subr.mxu0 0.0
  %162 = vmatpush1.msra.mxu0 %v127
  %163 = vmatprep.subr.mxu0 0.0
  %164 = vmatpush1.msra.mxu0 %v128
  %165 = vmatprep.subr.mxu0 0.0
  %166 = vmatpush1.msra.mxu0 %v129
  %167 = vmatprep.subr.mxu0 0.0
  %168 = vmatpush1.msra.mxu0 %v130
  %169 = vmatprep.subr.mxu0 0.0
  %170 = vmatpush1.msra.mxu0 %v131
  %171 = vmatprep.subr.mxu0 0.0
  %172 = vmatpush1.msra.mxu0 0.0
  %173 = vmatprep.subr.mxu0 0.0
  %174 = vmatpush1.msra.mxu0 0.0
  %175 = vmatprep.subr.mxu0 0.0
  %176 = vmatpush1.msra.mxu0 0.0
  %177 = vmatprep.subr.mxu0 0.0
  %178 = vmatpush1.msra.mxu0 0.0
  %179 = vmatprep.subr.mxu0 0.0
  %180 = vmatpush1.msra.mxu0 0.0
  %181 = vmatprep.subr.mxu0 0.0
  %182 = vmatpush1.msra.mxu0 0.0
  %183 = vmatprep.subr.mxu0 0.0
  %184 = vmatpush1.msra.mxu0 0.0
  %185 = vmatprep.subr.mxu0 0.0
  %186 = vmatpush1.msra.mxu0 0.0
  %187 = vmatprep.subr.mxu0 0.0
  %188 = vmatpush1.msra.mxu0 0.0
  %189 = vmatprep.subr.mxu0 0.0
  %190 = vmatpush1.msra.mxu0 0.0
  %191 = vmatprep.subr.mxu0 0.0
  %192 = vmatpush1.msra.mxu0 0.0
  %193 = vmatprep.subr.mxu0 0.0
  %194 = vmatpush1.msra.mxu0 0.0
  %195 = vmatprep.subr.mxu0 0.0
  %196 = vmatpush1.msra.mxu0 0.0
  %197 = vmatprep.subr.mxu0 0.0
  %198 = vmatpush1.msra.mxu0 0.0
  %199 = vmatprep.subr.mxu0 0.0
  %200 = vmatpush1.msra.mxu0 0.0
  %201 = vmatprep.subr.mxu0 0.0
  %202 = vmatpush1.msra.mxu0 0.0
  %203 = vmatprep.mubr.f32.mxu0 0.0
  %204 = vmatmul.mubr.f32.gmra.mrb[0].mxu0 %v115
  %v205 = vpop.f32.mrb[0].mxu0
  %v206 = vadd.f32 %v137, %v205
  %v207 = vpop.f32.mrb[0].mxu0
  %208 = vdwg.mxu0
  %v209 = vmax.f32 %v206, 0.0
  %v210 = vld [vmem:[%s5] sm:$0xff]
  %v211 = vld [vmem:[%s5 + $0x8] sm:$0xff]
  %v212 = vld [vmem:[%s5 + $0x10] sm:$0xff]
  %v213 = vld [vmem:[%s5 + $0x18] sm:$0xff]
  %v214 = vld [vmem:[%s5 + $0x20] sm:$0xff]
  %v215 = vld [vmem:[%s5 + $0x28] sm:$0xff]
  %v216 = vld [vmem:[%s5 + $0x30] sm:$0xff]
  %v217 = vld [vmem:[%s5 + $0x38] sm:$0xff]
  %v218 = vld [vmem:[%s6] sm:$0x1]
  %v220 = vlaneseq
  %v221 = vshrl.u32 %v220, 7
  %v222 = vsub.s32 0, %v221
  %v223 = vrot.slane %v218, %v222
  %vm225 = vcmask 523264
  %v227 = vsel %vm225, %v209, 0
  %229 = vmatprep.subr.mxu0 0.0
  %230 = vmatpush1.msra.mxu0 %v210
  %231 = vmatprep.subr.mxu0 0.0
  %232 = vmatpush1.msra.mxu0 %v211
  %233 = vmatprep.subr.mxu0 0.0
  %234 = vmatpush1.msra.mxu0 %v212
  %235 = vmatprep.subr.mxu0 0.0
  %236 = vmatpush1.msra.mxu0 %v213
  %237 = vmatprep.subr.mxu0 0.0
  %238 = vmatpush1.msra.mxu0 %v214
  %239 = vmatprep.subr.mxu0 0.0
  %240 = vmatpush1.msra.mxu0 %v215
  %241 = vmatprep.subr.mxu0 0.0
  %242 = vmatpush1.msra.mxu0 %v216
  %243 = vmatprep.subr.mxu0 0.0
  %244 = vmatpush1.msra.mxu0 %v217
  %245 = vmatprep.subr.mxu0 0.0
  %246 = vmatpush1.msra.mxu0 0.0
  %247 = vmatprep.subr.mxu0 0.0
  %248 = vmatpush1.msra.mxu0 0.0
  %249 = vmatprep.subr.mxu0 0.0
  %250 = vmatpush1.msra.mxu0 0.0
  %251 = vmatprep.subr.mxu0 0.0
  %252 = vmatpush1.msra.mxu0 0.0
  %253 = vmatprep.subr.mxu0 0.0
  %254 = vmatpush1.msra.mxu0 0.0
  %255 = vmatprep.subr.mxu0 0.0
  %256 = vmatpush1.msra.mxu0 0.0
  %257 = vmatprep.subr.mxu0 0.0
  %258 = vmatpush1.msra.mxu0 0.0
  %259 = vmatprep.subr.mxu0 0.0
  %260 = vmatpush1.msra.mxu0 0.0
  %261 = vmatprep.subr.mxu0 0.0
  %262 = vmatpush1.msra.mxu0 0.0
  %263 = vmatprep.subr.mxu0 0.0
  %264 = vmatpush1.msra.mxu0 0.0
  %265 = vmatprep.subr.mxu0 0.0
  %266 = vmatpush1.msra.mxu0 0.0
  %267 = vmatprep.subr.mxu0 0.0
  %268 = vmatpush1.msra.mxu0 0.0
  %269 = vmatprep.subr.mxu0 0.0
  %270 = vmatpush1.msra.mxu0 0.0
  %271 = vmatprep.subr.mxu0 0.0
  %272 = vmatpush1.msra.mxu0 0.0
  %273 = vmatprep.subr.mxu0 0.0
  %274 = vmatpush1.msra.mxu0 0.0
  %275 = vmatprep.subr.mxu0 0.0
  %276 = vmatpush1.msra.mxu0 0.0
  %277 = vmatprep.subr.mxu0 0.0
  %278 = vmatpush1.msra.mxu0 0.0
  %279 = vmatprep.subr.mxu0 0.0
  %280 = vmatpush1.msra.mxu0 0.0
  %281 = vmatprep.subr.mxu0 0.0
  %282 = vmatpush1.msra.mxu0 0.0
  %283 = vmatprep.subr.mxu0 0.0
  %284 = vmatpush1.msra.mxu0 0.0
  %285 = vmatprep.subr.mxu0 0.0
  %286 = vmatpush1.msra.mxu0 0.0
  %287 = vmatprep.subr.mxu0 0.0
  %288 = vmatpush1.msra.mxu0 0.0
  %289 = vmatprep.subr.mxu0 0.0
  %290 = vmatpush1.msra.mxu0 0.0
  %291 = vmatprep.subr.mxu0 0.0
  %292 = vmatpush1.msra.mxu0 0.0
  %293 = vmatprep.mubr.f32.mxu0 0.0
  %294 = vmatmul.mubr.f32.gmra.mrb[0].mxu0 %v227
  %v295 = vpop.f32.mrb[0].mxu0
  %v296 = vadd.f32 %v223, %v295
  %v297 = vpop.f32.mrb[0].mxu0
  %298 = vdwg.mxu0
  %v299 = vmax.f32 %v296, 0.0
  %v300 = vand.u32 2147483647, %v296
  %v301 = vsub.f32 0.0, %v300
  %v302 = vmul.f32 %v301, 1.442695
  %v303 = vpow.pop %v302
  %v304 = vadd.f32 %v303, 1.0
  %v305 = vlog2.pop %v304
  %v306 = vmul.f32 %v305, 0.6931472
  %v307 = vadd.f32 %v299, %v306
  %v308 = vadd.f32 %v307, 1e-06
  %vm309 = vcmask 39936
  %v310 = vsel %vm309, %v308, 0.0
  %311 = vadd.xlane.f32.xlu0 %v310
  %v312 = vpop.xlane.xlu0 %311
  %v313 = vrcp.pop %v312
  %v314 = vmul.f32 1.0, %v313
  %v315 = vld [vmem:[%s7] sm:$0x1f]
  %v316 = vld [vmem:[%s7 + $0x8] sm:$0x1f]
  %v318 = vsel %vm309, %v308, 0
  %vm320 = vcmask 1044480
  %v322 = vsel %vm320, %v315, 0
  %v325 = vsel %vm320, %v316, 0
  %327 = vmatprep.subr.mxu0 %v325
  %328 = vmatpush1.msra.mxu0 %v322
  %329 = vmatprep.subr.mxu0 0.0
  %330 = vmatpush1.msra.mxu0 0.0
  %331 = vmatprep.subr.mxu0 0.0
  %332 = vmatpush1.msra.mxu0 0.0
  %333 = vmatprep.subr.mxu0 0.0
  %334 = vmatpush1.msra.mxu0 0.0
  %335 = vmatprep.subr.mxu0 0.0
  %336 = vmatpush1.msra.mxu0 0.0
  %337 = vmatprep.subr.mxu0 0.0
  %338 = vmatpush1.msra.mxu0 0.0
  %339 = vmatprep.subr.mxu0 0.0
  %340 = vmatpush1.msra.mxu0 0.0
  %341 = vmatprep.subr.mxu0 0.0
  %342 = vmatpush1.msra.mxu0 0.0
  %343 = vmatprep.subr.mxu0 0.0
  %344 = vmatpush1.msra.mxu0 0.0
  %345 = vmatprep.subr.mxu0 0.0
  %346 = vmatpush1.msra.mxu0 0.0
  %347 = vmatprep.subr.mxu0 0.0
  %348 = vmatpush1.msra.mxu0 0.0
  %349 = vmatprep.subr.mxu0 0.0
  %350 = vmatpush1.msra.mxu0 0.0
  %351 = vmatprep.subr.mxu0 0.0
  %352 = vmatpush1.msra.mxu0 0.0
  %353 = vmatprep.subr.mxu0 0.0
  %354 = vmatpush1.msra.mxu0 0.0
  %355 = vmatprep.subr.mxu0 0.0
  %356 = vmatpush1.msra.mxu0 0.0
  %357 = vmatprep.subr.mxu0 0.0
  %358 = vmatpush1.msra.mxu0 0.0
  %359 = vmatprep.subr.mxu0 0.0
  %360 = vmatpush1.msra.mxu0 0.0
  %361 = vmatprep.subr.mxu0 0.0
  %362 = vmatpush1.msra.mxu0 0.0
  %363 = vmatprep.subr.mxu0 0.0
  %364 = vmatpush1.msra.mxu0 0.0
  %365 = vmatprep.subr.mxu0 0.0
  %366 = vmatpush1.msra.mxu0 0.0
  %367 = vmatprep.subr.mxu0 0.0
  %368 = vmatpush1.msra.mxu0 0.0
  %369 = vmatprep.subr.mxu0 0.0
  %370 = vmatpush1.msra.mxu0 0.0
  %371 = vmatprep.subr.mxu0 0.0
  %372 = vmatpush1.msra.mxu0 0.0
  %373 = vmatprep.subr.mxu0 0.0
  %374 = vmatpush1.msra.mxu0 0.0
  %375 = vmatprep.subr.mxu0 0.0
  %376 = vmatpush1.msra.mxu0 0.0
  %377 = vmatprep.subr.mxu0 0.0
  %378 = vmatpush1.msra.mxu0 0.0
  %379 = vmatprep.subr.mxu0 0.0
  %380 = vmatpush1.msra.mxu0 0.0
  %381 = vmatprep.subr.mxu0 0.0
  %382 = vmatpush1.msra.mxu0 0.0
  %383 = vmatprep.subr.mxu0 0.0
  %384 = vmatpush1.msra.mxu0 0.0
  %385 = vmatprep.subr.mxu0 0.0
  %386 = vmatpush1.msra.mxu0 0.0
  %387 = vmatprep.subr.mxu0 0.0
  %388 = vmatpush1.msra.mxu0 0.0
  %389 = vmatprep.subr.mxu0 0.0
  %390 = vmatpush1.msra.mxu0 0.0
  %391 = vmatprep.mubr.f32.mxu0 0.0
  %392 = vmatmul.mubr.f32.gmra.mrb[0].mxu0 %v318
  %v393 = vpop.f32.mrb[0].mxu0
  %v394 = vadd.f32 0.0, %v393
  %v395 = vpop.f32.mrb[0].mxu0
  %v396 = vadd.f32 0.0, %v395
  %397 = vdwg.mxu0
  %v398 = vmul.f32 %v314, %v396
  %v399 = vadd.f32 %v394, %v398
  %400 = vst [vmem:[%s8] sm:$0xff] %v399
  // Predicated region
  $region34: #{dirichlet_head_forward.1} parent=0 // pred_check
    _
  $region35: #{dirichlet_head_forward.1} parent=0 // pred_check_branch
    %402 = sbr.rel (0) target = $region37
  $region36: #{dirichlet_head_forward.1} parent=0 // pred_region
    _
  $region37: #{dirichlet_head_forward.1} parent=0 // pred_fallthru
    _
  // Predicated region
  $region38: #{dirichlet_head_forward.1} parent=0 // pred_check
    _
  $region39: #{dirichlet_head_forward.1} parent=0 // pred_check_branch
    %404 = sbr.rel (0) target = $region41
  $region40: #{dirichlet_head_forward.1} parent=0 // pred_region
    _
  $region41: #{dirichlet_head_forward.1} parent=0 // pred_fallthru
    _

</llo_original>
